<compile_context>
chip_gen: v6e
topology: v6e:2x2x1
jax: 0.10.0
libtpu: 0.0.40
codegen_flags: <defaults>
</compile_context>

<pallas_src>
import jax
import jax.numpy as jnp
from jax.experimental import pallas as pl
from jax.experimental.pallas import tpu as pltpu


def _round_up(x, m):
    return ((x + m - 1) // m) * m


def _mlp_kernel(x_ref, w1_ref, w2_ref, w3_ref, b_ref, o_ref):
    b = b_ref[...]  # (3, BP) f32 combined biases, grid-resident

    # fc1 + relu  (bf16 x bf16 -> f32 accumulation on the MXU)
    h1 = jnp.dot(x_ref[...], w1_ref[...], preferred_element_type=jnp.float32)
    h1 = jnp.maximum(h1 + b[0:1, : h1.shape[-1]], 0.0).astype(jnp.bfloat16)

    # fc2 + relu
    h2 = jnp.dot(h1, w2_ref[...], preferred_element_type=jnp.float32)
    h2 = jnp.maximum(h2 + b[1:2, : h2.shape[-1]], 0.0).astype(jnp.bfloat16)

    # fc3 (no activation) -> lane-dense (TB, out_pad) f32 store
    out = jnp.dot(h2, w3_ref[...], preferred_element_type=jnp.float32)
    o_ref[...] = (out + b[2:3, : out.shape[-1]]).astype(o_ref.dtype)


def grid_displace_forward(image, params, num_points, output_dim=3, *, tb_max=512):
    """image: (B, H*W) float32. Returns (B, num_points, output_dim) float32."""
    w1, b1, w2, b2, w3, b3 = (
        params["w1"], params["b1"], params["w2"],
        params["b2"], params["w3"], params["b3"],
    )
    B, input_dim = image.shape
    num_hidden = w1.shape[1]
    out_cols = num_points * output_dim

    # MXU / lane-dense padding
    in_pad = _round_up(input_dim, 128)
    h_pad = _round_up(max(num_hidden, 128), 128)
    out_pad = _round_up(max(out_cols, 128), 128)
    bias_pad = max(h_pad, out_pad)

    # batch tiling (sublane-aligned; pad B up to a multiple of the tile)
    tb = min(tb_max, _round_up(B, 8))
    b_rows = _round_up(B, tb)
    grid = (b_rows // tb,)

    # pad + cast: bf16 activation/weight stream, f32 biases & accumulation
    x_p = jnp.zeros((b_rows, in_pad), jnp.bfloat16)
    x_p = x_p.at[:B, :input_dim].set(image.astype(jnp.bfloat16))
    w1_p = jnp.zeros((in_pad, h_pad), jnp.bfloat16)
    w1_p = w1_p.at[:input_dim, :num_hidden].set(w1.astype(jnp.bfloat16))
    w2_p = jnp.zeros((h_pad, h_pad), jnp.bfloat16)
    w2_p = w2_p.at[:num_hidden, :num_hidden].set(w2.astype(jnp.bfloat16))
    w3_p = jnp.zeros((h_pad, out_pad), jnp.bfloat16)
    w3_p = w3_p.at[:num_hidden, :out_cols].set(w3.astype(jnp.bfloat16))
    bias = jnp.zeros((3, bias_pad), jnp.float32)
    bias = bias.at[0, :num_hidden].set(b1.reshape(-1))
    bias = bias.at[1, :num_hidden].set(b2.reshape(-1))
    bias = bias.at[2, :out_cols].set(b3.reshape(-1))

    flops = 2 * b_rows * (in_pad * h_pad + h_pad * h_pad + h_pad * out_pad)
    bytes_accessed = (
        x_p.size * 2 + w1_p.size * 2 + w2_p.size * 2 + w3_p.size * 2
        + bias.size * 4 + b_rows * out_pad * 4
    )

    flat = pl.pallas_call(
        _mlp_kernel,
        out_shape=jax.ShapeDtypeStruct((b_rows, out_pad), jnp.float32),
        grid=grid,
        in_specs=[
            pl.BlockSpec((tb, in_pad), lambda i: (i, 0)),        # streamed per tile
            pl.BlockSpec((in_pad, h_pad), lambda i: (0, 0)),     # resident
            pl.BlockSpec((h_pad, h_pad), lambda i: (0, 0)),      # resident
            pl.BlockSpec((h_pad, out_pad), lambda i: (0, 0)),    # resident
            pl.BlockSpec((3, bias_pad), lambda i: (0, 0)),       # resident
        ],
        out_specs=pl.BlockSpec((tb, out_pad), lambda i: (i, 0)),
        compiler_params=pltpu.CompilerParams(
            dimension_semantics=("parallel",),
        ),
        cost_estimate=pl.CostEstimate(
            flops=flops, transcendentals=0, bytes_accessed=bytes_accessed
        ),
    )(x_p, w1_p, w2_p, w3_p, bias)

    # slice back to real rows/cols, then the PyTorch .view(...) equivalent (glue)
    return flat[:B, :out_cols].reshape(B, num_points, output_dim)


def init_params(key, input_dim, num_hidden, num_points, output_dim=3):
    """Deterministic synthetic init (PyTorch-Linear-like uniform bounds), f32."""
    ks = jax.random.split(key, 6)

    def lin(kw, kb, fan_in, fan_out):
        bound = 1.0 / jnp.sqrt(jnp.float32(fan_in))
        w = jax.random.uniform(kw, (fan_in, fan_out), jnp.float32, -bound, bound)
        b = jax.random.uniform(kb, (1, fan_out), jnp.float32, -bound, bound)
        return w, b

    w1, b1 = lin(ks[0], ks[1], input_dim, num_hidden)
    w2, b2 = lin(ks[2], ks[3], num_hidden, num_hidden)
    w3, b3 = lin(ks[4], ks[5], num_hidden, num_points * output_dim)
    return {"w1": w1, "b1": b1, "w2": w2, "b2": b2, "w3": w3, "b3": b3}


def _reference_forward_f32(image, params, num_points, output_dim=3):
    h1 = jnp.maximum(image @ params["w1"] + params["b1"], 0.0)
    h2 = jnp.maximum(h1 @ params["w2"] + params["b2"], 0.0)
    out = h2 @ params["w3"] + params["b3"]
    return out.reshape(-1, num_points, output_dim)


def _reference_forward_bf16(image, params, num_points, output_dim=3):
    # mirrors the kernel's numerics: bf16 operands, f32 accumulation, f32 bias
    x = image.astype(jnp.bfloat16)
    w1 = params["w1"].astype(jnp.bfloat16)
    w2 = params["w2"].astype(jnp.bfloat16)
    w3 = params["w3"].astype(jnp.bfloat16)
    h1 = jnp.dot(x, w1, preferred_element_type=jnp.float32) + params["b1"]
    h1 = jnp.maximum(h1, 0.0).astype(jnp.bfloat16)
    h2 = jnp.dot(h1, w2, preferred_element_type=jnp.float32) + params["b2"]
    h2 = jnp.maximum(h2, 0.0).astype(jnp.bfloat16)
    out = jnp.dot(h2, w3, preferred_element_type=jnp.float32) + params["b3"]
    return out.reshape(-1, num_points, output_dim)


if __name__ == "__main__":
    # GridDisplace(image_shape=(16, 16), num_points=8, num_hidden=32)
    height, width = 16, 16
    num_points = 8
    num_hidden = 32
    output_dim = 3
    batch = 2
    input_dim = height * width

    key = jax.random.PRNGKey(0)
    k_params, k_img = jax.random.split(key)
    params = init_params(k_params, input_dim, num_hidden, num_points, output_dim)

    # image flattened to (B, H*W), matching nn.Linear(input_dim=H*W)
    image = jax.random.normal(k_img, (batch, input_dim), dtype=jnp.float32)

    vector_field = grid_displace_forward(image, params, num_points, output_dim)
    vector_field = jax.block_until_ready(vector_field)

    assert vector_field.shape == (batch, num_points, output_dim)

    # tight check against a numerics-matched (bf16-operand, f32-accum) reference
    ref_bf16 = _reference_forward_bf16(image, params, num_points, output_dim)
    assert jnp.allclose(vector_field, ref_bf16, atol=1e-3, rtol=1e-3)

    # sanity check against the original pure-f32 module semantics
    ref_f32 = _reference_forward_f32(image, params, num_points, output_dim)
    assert jnp.allclose(vector_field, ref_f32, atol=5e-2, rtol=5e-2)

    print("KERNEL_OK")
</pallas_src>

<mosaic_0001>
module attributes {stable_mosaic.version = 11 : i64} {
  func.func @_mlp_kernel(%arg0: i32, %arg1: memref<8x256xbf16, #tpu.memory_space<vmem>>, %arg2: memref<256x128xbf16, #tpu.memory_space<vmem>>, %arg3: memref<128x128xbf16, #tpu.memory_space<vmem>>, %arg4: memref<128x128xbf16, #tpu.memory_space<vmem>>, %arg5: memref<3x128xf32, #tpu.memory_space<vmem>>, %arg6: memref<8x128xf32, #tpu.memory_space<vmem>>) attributes {dimension_semantics = [#tpu.dimension_semantics<parallel>], iteration_bounds = array<i64: 1>, scalar_prefetch = 0 : i64, scratch_operands = 0 : i64, tpu.core_type = #tpu.core_type<tc>, window_params = [{transform_indices = @transform_0, window_bounds = array<i64: 8, 256>}, {pipeline_mode = #tpu.pipeline_mode<synchronous>, transform_indices = @transform_1, window_bounds = array<i64: 256, 128>}, {pipeline_mode = #tpu.pipeline_mode<synchronous>, transform_indices = @transform_2, window_bounds = array<i64: 128, 128>}, {pipeline_mode = #tpu.pipeline_mode<synchronous>, transform_indices = @transform_3, window_bounds = array<i64: 128, 128>}, {pipeline_mode = #tpu.pipeline_mode<synchronous>, transform_indices = @transform_4, window_bounds = array<i64: 3, 128>}, {transform_indices = @transform_5, window_bounds = array<i64: 8, 128>}]} {
    %c0 = arith.constant 0 : index
    %c0_0 = arith.constant 0 : index
    %0 = vector.load %arg5[%c0, %c0_0] : memref<3x128xf32, #tpu.memory_space<vmem>>, vector<3x128xf32>
    %c0_1 = arith.constant 0 : index
    %c0_2 = arith.constant 0 : index
    %1 = vector.load %arg1[%c0_1, %c0_2] : memref<8x256xbf16, #tpu.memory_space<vmem>>, vector<8x256xbf16>
    %c0_3 = arith.constant 0 : index
    %c0_4 = arith.constant 0 : index
    %2 = vector.load %arg2[%c0_3, %c0_4] : memref<256x128xbf16, #tpu.memory_space<vmem>>, vector<256x128xbf16>
    %cst = arith.constant dense<0.000000e+00> : vector<8x128xf32>
    %3 = tpu.matmul %1, %2, %cst {dimension_numbers = #tpu.dot_dimension_numbers<[1], [0], [0], [1], [0, 0, 1, 1], [], []>} : vector<8x256xbf16>, vector<256x128xbf16>, vector<8x128xf32> -> vector<8x128xf32>
    %4 = vector.extract_strided_slice %0 {offsets = [0, 0], sizes = [1, 128], strides = [1, 1]} : vector<3x128xf32> to vector<1x128xf32>
    %5 = vector.broadcast %4 : vector<1x128xf32> to vector<8x128xf32>
    %6 = arith.addf %3, %5 : vector<8x128xf32>
    %cst_5 = arith.constant 0.000000e+00 : f32
    %7 = vector.broadcast %cst_5 : f32 to vector<8x128xf32>
    %8 = arith.maximumf %6, %7 : vector<8x128xf32>
    %9 = arith.truncf %8 : vector<8x128xf32> to vector<8x128xbf16>
    %c0_6 = arith.constant 0 : index
    %c0_7 = arith.constant 0 : index
    %10 = vector.load %arg3[%c0_6, %c0_7] : memref<128x128xbf16, #tpu.memory_space<vmem>>, vector<128x128xbf16>
    %cst_8 = arith.constant dense<0.000000e+00> : vector<8x128xf32>
    %11 = tpu.matmul %9, %10, %cst_8 {dimension_numbers = #tpu.dot_dimension_numbers<[1], [0], [0], [1], [0, 0, 1, 1], [], []>} : vector<8x128xbf16>, vector<128x128xbf16>, vector<8x128xf32> -> vector<8x128xf32>
    %12 = vector.extract_strided_slice %0 {offsets = [1, 0], sizes = [1, 128], strides = [1, 1]} : vector<3x128xf32> to vector<1x128xf32>
    %13 = vector.broadcast %12 : vector<1x128xf32> to vector<8x128xf32>
    %14 = arith.addf %11, %13 : vector<8x128xf32>
    %cst_9 = arith.constant 0.000000e+00 : f32
    %15 = vector.broadcast %cst_9 : f32 to vector<8x128xf32>
    %16 = arith.maximumf %14, %15 : vector<8x128xf32>
    %17 = arith.truncf %16 : vector<8x128xf32> to vector<8x128xbf16>
    %c0_10 = arith.constant 0 : index
    %c0_11 = arith.constant 0 : index
    %18 = vector.load %arg4[%c0_10, %c0_11] : memref<128x128xbf16, #tpu.memory_space<vmem>>, vector<128x128xbf16>
    %cst_12 = arith.constant dense<0.000000e+00> : vector<8x128xf32>
    %19 = tpu.matmul %17, %18, %cst_12 {dimension_numbers = #tpu.dot_dimension_numbers<[1], [0], [0], [1], [0, 0, 1, 1], [], []>} : vector<8x128xbf16>, vector<128x128xbf16>, vector<8x128xf32> -> vector<8x128xf32>
    %20 = vector.extract_strided_slice %0 {offsets = [2, 0], sizes = [1, 128], strides = [1, 1]} : vector<3x128xf32> to vector<1x128xf32>
    %21 = vector.broadcast %20 : vector<1x128xf32> to vector<8x128xf32>
    %22 = arith.addf %19, %21 : vector<8x128xf32>
    %c0_13 = arith.constant 0 : index
    %c0_14 = arith.constant 0 : index
    %23 = vector.load %arg6[%c0_13, %c0_14] : memref<8x128xf32, #tpu.memory_space<vmem>>, vector<8x128xf32>
    tpu.vector_store %arg6[%c0_13, %c0_14], %22 {strides = array<i32>} : memref<8x128xf32, #tpu.memory_space<vmem>>, vector<8x128xf32>,
    return
  }
  func.func @transform_0(%arg0: i32) -> (i32, i32) {
    %c0_i32 = arith.constant 0 : i32
    %c0_i32_0 = arith.constant 0 : i32
    return %arg0, %c0_i32 : i32, i32
  }
  func.func @transform_1(%arg0: i32) -> (i32, i32) {
    %c0_i32 = arith.constant 0 : i32
    %c0_i32_0 = arith.constant 0 : i32
    %c0_i32_1 = arith.constant 0 : i32
    return %c0_i32, %c0_i32_0 : i32, i32
  }
  func.func @transform_2(%arg0: i32) -> (i32, i32) {
    %c0_i32 = arith.constant 0 : i32
    %c0_i32_0 = arith.constant 0 : i32
    %c0_i32_1 = arith.constant 0 : i32
    return %c0_i32, %c0_i32_0 : i32, i32
  }
  func.func @transform_3(%arg0: i32) -> (i32, i32) {
    %c0_i32 = arith.constant 0 : i32
    %c0_i32_0 = arith.constant 0 : i32
    %c0_i32_1 = arith.constant 0 : i32
    return %c0_i32, %c0_i32_0 : i32, i32
  }
  func.func @transform_4(%arg0: i32) -> (i32, i32) {
    %c0_i32 = arith.constant 0 : i32
    %c0_i32_0 = arith.constant 0 : i32
    %c0_i32_1 = arith.constant 0 : i32
    return %c0_i32, %c0_i32_0 : i32, i32
  }
  func.func @transform_5(%arg0: i32) -> (i32, i32) {
    %c0_i32 = arith.constant 0 : i32
    %c0_i32_0 = arith.constant 0 : i32
    return %arg0, %c0_i32 : i32, i32
  }
}

</mosaic_0001>

<llo_original>
// kernel: tpu_custom_call.1
$region0: #{tpu_custom_call.1}
  #allocation0 [shape = 'u32[]', space=smem, size = 0x4, offset = 0x4, fixed_abs, tag = 'smem constant byte address 0x4 - core index']
  #allocation1 [shape = 'u32[144,128]{1,0:T(1,128)}', space=vmem, size = 0x12000, scoped, tag = 'internal scratch']
  %s0 = inlined_call_operand.hbm [shape: bf16[8,256], index: 0, kind: input, shape index: {}]
  %s1 = inlined_call_operand.hbm [shape: bf16[256,128], index: 1, kind: input, shape index: {}]
  %s2 = inlined_call_operand.hbm [shape: bf16[128,128], index: 2, kind: input, shape index: {}]
  %s3 = inlined_call_operand.hbm [shape: bf16[128,128], index: 3, kind: input, shape index: {}]
  %s4 = inlined_call_operand.vmem [shape: f32[3,128], index: 4, kind: input, shape index: {}]
  %s5 = inlined_call_operand.hbm [shape: f32[8,128], index: 5, kind: output, shape index: {}]
  %s6 = sld [smem:[#allocation0]]
  $region46: #{tpu_custom_call.1} parent=0
    _
  %s8 = ssub.s32 1, %s6
  %s9 = scalar_select 0, %s8, %s6
  $region1: #{tpu_custom_call.1} parent=0
    #allocation2 [shape = 'u8[4096]{0}', space=vmem, size = 0x1000, scoped, tag = 'input window, operand 0, single buffered']
    #allocation3 [shape = 's32[1]{0}', space=sflag, size = 0x4, scoped, tag = 'scoped memory for tpu_custom_call.1']
    #allocation4 [shape = 's32[1]{0}', space=sflag, size = 0x4, scoped, tag = 'scoped memory for tpu_custom_call.1']
    #allocation5 [shape = 'u8[65536]{0}', space=vmem, size = 0x10000, scoped, tag = 'input window, operand 1, single buffered']
    #allocation6 [shape = 's32[1]{0}', space=sflag, size = 0x4, scoped, tag = 'scoped memory for tpu_custom_call.1']
    #allocation7 [shape = 'u8[32768]{0}', space=vmem, size = 0x8000, scoped, tag = 'input window, operand 2, single buffered']
    #allocation8 [shape = 'u8[32768]{0}', space=vmem, size = 0x8000, scoped, tag = 'input window, operand 3, single buffered']
    #allocation9 [shape = 's32[1]{0}', space=sflag, size = 0x4, scoped, tag = 'scoped memory for tpu_custom_call.1']
    #allocation10 [shape = 'u8[4096]{0}', space=vmem, size = 0x1000, scoped, tag = 'output window, operand 0, single buffered']
    %10 = vsyncpa [#allocation3], 0
    %11 = vsyncpa [#allocation6], 0
    %12 = vsyncpa [#allocation9], 0
    %13 = vsyncpa [#allocation4], 0
    // Predicated region
    $region2: #{tpu_custom_call.1} parent=1 // pred_check
      _
    $region3: #{tpu_custom_call.1} parent=1 // pred_check_branch
      %15 = sbr.rel (0) target = $region5
    $region4: #{tpu_custom_call.1} parent=1 // pred_region
      %s17 = ssub.s32 128, 128
      %18 = vsyncadd [#allocation3], %s17
      %s20 = sshll.u32 [#allocation2], 4
      %s21 = int_to_ptr.vmem [resolvable:$true] %s20
      %23 = dma.hbm_to_vmem [thread:$0]  %s0, 128, %s21, [#allocation3]
    $region5: #{tpu_custom_call.1} parent=1 // pred_fallthru
      _
    // Predicated region
    $region6: #{tpu_custom_call.1} parent=1 // pred_check
      _
    $region7: #{tpu_custom_call.1} parent=1 // pred_check_branch
      %25 = sbr.rel (0) target = $region9
    $region8: #{tpu_custom_call.1} parent=1 // pred_region
      %s27 = ssub.s32 2048, 2048
      %28 = vsyncadd [#allocation6], %s27
      %s29 = sshll.u32 [#allocation5], 4
      %s30 = int_to_ptr.vmem [resolvable:$true] %s29
      %35 = dma.hbm_to_vmem [thread:$0]  %s1, 2048, %s30, [#allocation6], 64, 64, 4
    $region9: #{tpu_custom_call.1} parent=1 // pred_fallthru
      _
    // Predicated region
    $region10: #{tpu_custom_call.1} parent=1 // pred_check
      _
    $region11: #{tpu_custom_call.1} parent=1 // pred_check_branch
      %37 = sbr.rel (0) target = $region13
    $region12: #{tpu_custom_call.1} parent=1 // pred_region
      %s39 = ssub.s32 1024, 1024
      %40 = vsyncadd [#allocation6], %s39
      %s41 = sshll.u32 [#allocation7], 4
      %s42 = int_to_ptr.vmem [resolvable:$true] %s41
      %47 = dma.hbm_to_vmem [thread:$0]  %s2, 1024, %s42, [#allocation6], 64, 64, 4
    $region13: #{tpu_custom_call.1} parent=1 // pred_fallthru
      _
    // Predicated region
    $region14: #{tpu_custom_call.1} parent=1 // pred_check
      _
    $region15: #{tpu_custom_call.1} parent=1 // pred_check_branch
      %49 = sbr.rel (0) target = $region17
    $region16: #{tpu_custom_call.1} parent=1 // pred_region
      %s51 = ssub.s32 1024, 1024
      %52 = vsyncadd [#allocation9], %s51
      %s53 = sshll.u32 [#allocation8], 4
      %s54 = int_to_ptr.vmem [resolvable:$true] %s53
      %59 = dma.hbm_to_vmem [thread:$0]  %s3, 1024, %s54, [#allocation9], 64, 64, 4
    $region17: #{tpu_custom_call.1} parent=1 // pred_fallthru
      _
    // Predicated region
    $region18: #{tpu_custom_call.1} parent=1 // pred_check
      _
    $region19: #{tpu_custom_call.1} parent=1 // pred_check_branch
      %61 = sbr.rel (0) target = $region21
    $region20: #{tpu_custom_call.1} parent=1 // pred_region
      _
    $region21: #{tpu_custom_call.1} parent=1 // pred_fallthru
      _
    // Predicated region
    $region22: #{tpu_custom_call.1} parent=1 // pred_check
      _
    $region23: #{tpu_custom_call.1} parent=1 // pred_check_branch
      %63 = sbr.rel (0) target = $region25
    $region24: #{tpu_custom_call.1} parent=1 // pred_region
      %64 = dma.done [#allocation3], 128
    $region25: #{tpu_custom_call.1} parent=1 // pred_fallthru
      _
    // Predicated region
    $region26: #{tpu_custom_call.1} parent=1 // pred_check
      _
    $region27: #{tpu_custom_call.1} parent=1 // pred_check_branch
      %66 = sbr.rel (0) target = $region29
    $region28: #{tpu_custom_call.1} parent=1 // pred_region
      %67 = dma.done [#allocation6], 2048
    $region29: #{tpu_custom_call.1} parent=1 // pred_fallthru
      _
    // Predicated region
    $region30: #{tpu_custom_call.1} parent=1 // pred_check
      _
    $region31: #{tpu_custom_call.1} parent=1 // pred_check_branch
      %69 = sbr.rel (0) target = $region33
    $region32: #{tpu_custom_call.1} parent=1 // pred_region
      %70 = dma.done [#allocation6], 1024
    $region33: #{tpu_custom_call.1} parent=1 // pred_fallthru
      _
    // Predicated region
    $region34: #{tpu_custom_call.1} parent=1 // pred_check
      _
    $region35: #{tpu_custom_call.1} parent=1 // pred_check_branch
      %72 = sbr.rel (0) target = $region37
    $region36: #{tpu_custom_call.1} parent=1 // pred_region
      %73 = dma.done [#allocation9], 1024
    $region37: #{tpu_custom_call.1} parent=1 // pred_fallthru
      _
    %v75 = vld [vmem:[%s4] sm:$0x7]
    %v76 = vld [vmem:[#allocation2] sm:$0xff]
    %v77 = vld [vmem:[#allocation5] sm:$0xf]
    %v78 = vld [vmem:[#allocation5 + $0x4] sm:$0xf]
    %v79 = vld [vmem:[#allocation5 + $0x8] sm:$0xf]
    %v80 = vld [vmem:[#allocation5 + $0xc] sm:$0xf]
    %v81 = vld [vmem:[#allocation5 + $0x10] sm:$0xf]
    %v82 = vld [vmem:[#allocation5 + $0x14] sm:$0xf]
    %v83 = vld [vmem:[#allocation5 + $0x18] sm:$0xf]
    %v84 = vld [vmem:[#allocation5 + $0x1c] sm:$0xf]
    %v85 = vld [vmem:[#allocation5 + $0x20] sm:$0xf]
    %v86 = vld [vmem:[#allocation5 + $0x24] sm:$0xf]
    %v87 = vld [vmem:[#allocation5 + $0x28] sm:$0xf]
    %v88 = vld [vmem:[#allocation5 + $0x2c] sm:$0xf]
    %v89 = vld [vmem:[#allocation5 + $0x30] sm:$0xf]
    %v90 = vld [vmem:[#allocation5 + $0x34] sm:$0xf]
    %v91 = vld [vmem:[#allocation5 + $0x38] sm:$0xf]
    %v92 = vld [vmem:[#allocation5 + $0x3c] sm:$0xf]
    %v93 = vld [vmem:[#allocation5 + $0x40] sm:$0xf]
    %v94 = vld [vmem:[#allocation5 + $0x44] sm:$0xf]
    %v95 = vld [vmem:[#allocation5 + $0x48] sm:$0xf]
    %v96 = vld [vmem:[#allocation5 + $0x4c] sm:$0xf]
    %v97 = vld [vmem:[#allocation5 + $0x50] sm:$0xf]
    %v98 = vld [vmem:[#allocation5 + $0x54] sm:$0xf]
    %v99 = vld [vmem:[#allocation5 + $0x58] sm:$0xf]
    %v100 = vld [vmem:[#allocation5 + $0x5c] sm:$0xf]
    %v101 = vld [vmem:[#allocation5 + $0x60] sm:$0xf]
    %v102 = vld [vmem:[#allocation5 + $0x64] sm:$0xf]
    %v103 = vld [vmem:[#allocation5 + $0x68] sm:$0xf]
    %v104 = vld [vmem:[#allocation5 + $0x6c] sm:$0xf]
    %v105 = vld [vmem:[#allocation5 + $0x70] sm:$0xf]
    %v106 = vld [vmem:[#allocation5 + $0x74] sm:$0xf]
    %v107 = vld [vmem:[#allocation5 + $0x78] sm:$0xf]
    %v108 = vld [vmem:[#allocation5 + $0x7c] sm:$0xf]
    %v109 = vlaneseq
    %v110 = vshrl.u32 %v109, 7
    %v111 = vsub.s32 0, %v110
    %v112 = vrot.slane %v75, %v111
    %v114 = vunpack.c.l.b16 %v76
    %v115 = vunpack.c.h.b16 %v76
    %v116 = vpack.c.b16 %v114, %v114
    %v117 = vpack.c.b16 %v115, %v115
    %v152 = vunpack.c.l.b16 %v77
    %v153 = vunpack.c.l.b16 %v78
    %v154 = vunpack.c.l.b16 %v79
    %v155 = vunpack.c.l.b16 %v80
    %v156 = vunpack.c.l.b16 %v81
    %v157 = vunpack.c.l.b16 %v82
    %v158 = vunpack.c.l.b16 %v83
    %v159 = vunpack.c.l.b16 %v84
    %v160 = vunpack.c.l.b16 %v85
    %v161 = vunpack.c.l.b16 %v86
    %v162 = vunpack.c.l.b16 %v87
    %v163 = vunpack.c.l.b16 %v88
    %v164 = vunpack.c.l.b16 %v89
    %v165 = vunpack.c.l.b16 %v90
    %v166 = vunpack.c.l.b16 %v91
    %v167 = vunpack.c.l.b16 %v92
    %v168 = vunpack.c.l.b16 %v93
    %v169 = vunpack.c.l.b16 %v94
    %v170 = vunpack.c.l.b16 %v95
    %v171 = vunpack.c.l.b16 %v96
    %v172 = vunpack.c.l.b16 %v97
    %v173 = vunpack.c.l.b16 %v98
    %v174 = vunpack.c.l.b16 %v99
    %v175 = vunpack.c.l.b16 %v100
    %v176 = vunpack.c.l.b16 %v101
    %v177 = vunpack.c.l.b16 %v102
    %v178 = vunpack.c.l.b16 %v103
    %v179 = vunpack.c.l.b16 %v104
    %v180 = vunpack.c.l.b16 %v105
    %v181 = vunpack.c.l.b16 %v106
    %v182 = vunpack.c.l.b16 %v107
    %v183 = vunpack.c.l.b16 %v108
    %v184 = vpack.c.b16 %v153, %v152
    %v185 = vpack.c.b16 %v155, %v154
    %v186 = vpack.c.b16 %v157, %v156
    %v187 = vpack.c.b16 %v159, %v158
    %v188 = vpack.c.b16 %v161, %v160
    %v189 = vpack.c.b16 %v163, %v162
    %v190 = vpack.c.b16 %v165, %v164
    %v191 = vpack.c.b16 %v167, %v166
    %v192 = vpack.c.b16 %v169, %v168
    %v193 = vpack.c.b16 %v171, %v170
    %v194 = vpack.c.b16 %v173, %v172
    %v195 = vpack.c.b16 %v175, %v174
    %v196 = vpack.c.b16 %v177, %v176
    %v197 = vpack.c.b16 %v179, %v178
    %v198 = vpack.c.b16 %v181, %v180
    %v199 = vpack.c.b16 %v183, %v182
    %216 = vmatprep.subr.bf16.mxu0 0
    %217 = vmatpush1.bf16.msra.mxu0 %v191
    %218 = vmatprep.subr.bf16.mxu0 0
    %219 = vmatpush1.bf16.msra.mxu0 %v190
    %220 = vmatprep.subr.bf16.mxu0 0
    %221 = vmatpush1.bf16.msra.mxu0 %v189
    %222 = vmatprep.subr.bf16.mxu0 0
    %223 = vmatpush1.bf16.msra.mxu0 %v188
    %224 = vmatprep.subr.bf16.mxu0 0
    %225 = vmatpush1.bf16.msra.mxu0 %v187
    %226 = vmatprep.subr.bf16.mxu0 0
    %227 = vmatpush1.bf16.msra.mxu0 %v186
    %228 = vmatprep.subr.bf16.mxu0 0
    %229 = vmatpush1.bf16.msra.mxu0 %v185
    %230 = vmatprep.subr.bf16.mxu0 0
    %231 = vmatpush1.bf16.msra.mxu0 %v184
    %232 = vmatprep.subr.bf16.mxu0 0
    %233 = vmatpush2.bf16.msra.mxu0 %v199
    %234 = vmatprep.subr.bf16.mxu0 0
    %235 = vmatpush2.bf16.msra.mxu0 %v198
    %236 = vmatprep.subr.bf16.mxu0 0
    %237 = vmatpush2.bf16.msra.mxu0 %v197
    %238 = vmatprep.subr.bf16.mxu0 0
    %239 = vmatpush2.bf16.msra.mxu0 %v196
    %240 = vmatprep.subr.bf16.mxu0 0
    %241 = vmatpush2.bf16.msra.mxu0 %v195
    %242 = vmatprep.subr.bf16.mxu0 0
    %243 = vmatpush2.bf16.msra.mxu0 %v194
    %244 = vmatprep.subr.bf16.mxu0 0
    %245 = vmatpush2.bf16.msra.mxu0 %v193
    %246 = vmatprep.subr.bf16.mxu0 0
    %247 = vmatpush2.bf16.msra.mxu0 %v192
    %248 = vmatprep.mubr.bf16.mxu0 %v117
    %249 = vmatmul.mubr.bf16.gmra.mxu0 %v116
    %v250 = vpop.f32.mrf.mxu0
    %v251 = vadd.f32 %v112, %v250
    %v252 = vpop.f32.mrf.mxu0
    %v253 = vpop.f32.mrf.mxu0
    %v254 = vpop.f32.mrf.mxu0
    %255 = vdwg.mxu0
    %v256 = vmax.f32 %v251, 0.0
    %v257 = vpack.c.bf16 %v256, %v256
    %v258 = vld [vmem:[#allocation7] sm:$0xf]
    %v259 = vld [vmem:[#allocation7 + $0x4] sm:$0xf]
    %v260 = vld [vmem:[#allocation7 + $0x8] sm:$0xf]
    %v261 = vld [vmem:[#allocation7 + $0xc] sm:$0xf]
    %v262 = vld [vmem:[#allocation7 + $0x10] sm:$0xf]
    %v263 = vld [vmem:[#allocation7 + $0x14] sm:$0xf]
    %v264 = vld [vmem:[#allocation7 + $0x18] sm:$0xf]
    %v265 = vld [vmem:[#allocation7 + $0x1c] sm:$0xf]
    %v266 = vld [vmem:[#allocation7 + $0x20] sm:$0xf]
    %v267 = vld [vmem:[#allocation7 + $0x24] sm:$0xf]
    %v268 = vld [vmem:[#allocation7 + $0x28] sm:$0xf]
    %v269 = vld [vmem:[#allocation7 + $0x2c] sm:$0xf]
    %v270 = vld [vmem:[#allocation7 + $0x30] sm:$0xf]
    %v271 = vld [vmem:[#allocation7 + $0x34] sm:$0xf]
    %v272 = vld [vmem:[#allocation7 + $0x38] sm:$0xf]
    %v273 = vld [vmem:[#allocation7 + $0x3c] sm:$0xf]
    %v274 = vlaneseq
    %v275 = vshrl.u32 %v274, 7
    %v276 = vsub.s32 1, %v275
    %v277 = vrot.slane %v75, %v276
    %v294 = vunpack.c.l.b16 %v258
    %v295 = vunpack.c.l.b16 %v259
    %v296 = vunpack.c.l.b16 %v260
    %v297 = vunpack.c.l.b16 %v261
    %v298 = vunpack.c.l.b16 %v262
    %v299 = vunpack.c.l.b16 %v263
    %v300 = vunpack.c.l.b16 %v264
    %v301 = vunpack.c.l.b16 %v265
    %v302 = vunpack.c.l.b16 %v266
    %v303 = vunpack.c.l.b16 %v267
    %v304 = vunpack.c.l.b16 %v268
    %v305 = vunpack.c.l.b16 %v269
    %v306 = vunpack.c.l.b16 %v270
    %v307 = vunpack.c.l.b16 %v271
    %v308 = vunpack.c.l.b16 %v272
    %v309 = vunpack.c.l.b16 %v273
    %v310 = vpack.c.b16 %v295, %v294
    %v311 = vpack.c.b16 %v297, %v296
    %v312 = vpack.c.b16 %v299, %v298
    %v313 = vpack.c.b16 %v301, %v300
    %v314 = vpack.c.b16 %v303, %v302
    %v315 = vpack.c.b16 %v305, %v304
    %v316 = vpack.c.b16 %v307, %v306
    %v317 = vpack.c.b16 %v309, %v308
    %326 = vmatprep.subr.bf16.mxu0 0
    %327 = vmatpush1.bf16.msra.mxu0 %v317
    %328 = vmatprep.subr.bf16.mxu0 0
    %329 = vmatpush1.bf16.msra.mxu0 %v316
    %330 = vmatprep.subr.bf16.mxu0 0
    %331 = vmatpush1.bf16.msra.mxu0 %v315
    %332 = vmatprep.subr.bf16.mxu0 0
    %333 = vmatpush1.bf16.msra.mxu0 %v314
    %334 = vmatprep.subr.bf16.mxu0 0
    %335 = vmatpush1.bf16.msra.mxu0 %v313
    %336 = vmatprep.subr.bf16.mxu0 0
    %337 = vmatpush1.bf16.msra.mxu0 %v312
    %338 = vmatprep.subr.bf16.mxu0 0
    %339 = vmatpush1.bf16.msra.mxu0 %v311
    %340 = vmatprep.subr.bf16.mxu0 0
    %341 = vmatpush1.bf16.msra.mxu0 %v310
    %342 = vmatprep.subr.bf16.mxu0 0
    %343 = vmatpush2.bf16.msra.mxu0 0
    %344 = vmatprep.subr.bf16.mxu0 0
    %345 = vmatpush2.bf16.msra.mxu0 0
    %346 = vmatprep.subr.bf16.mxu0 0
    %347 = vmatpush2.bf16.msra.mxu0 0
    %348 = vmatprep.subr.bf16.mxu0 0
    %349 = vmatpush2.bf16.msra.mxu0 0
    %350 = vmatprep.subr.bf16.mxu0 0
    %351 = vmatpush2.bf16.msra.mxu0 0
    %352 = vmatprep.subr.bf16.mxu0 0
    %353 = vmatpush2.bf16.msra.mxu0 0
    %354 = vmatprep.subr.bf16.mxu0 0
    %355 = vmatpush2.bf16.msra.mxu0 0
    %356 = vmatprep.subr.bf16.mxu0 0
    %357 = vmatpush2.bf16.msra.mxu0 0
    %358 = vmatprep.mubr.bf16.mxu0 0
    %359 = vmatmul.mubr.bf16.gmra.mxu0 %v257
    %v360 = vpop.f32.mrf.mxu0
    %v361 = vadd.f32 %v277, %v360
    %v362 = vpop.f32.mrf.mxu0
    %v363 = vpop.f32.mrf.mxu0
    %v364 = vpop.f32.mrf.mxu0
    %365 = vdwg.mxu0
    %v366 = vmax.f32 %v361, 0.0
    %v367 = vpack.c.bf16 %v366, %v366
    %v368 = vld [vmem:[#allocation8] sm:$0xf]
    %v369 = vld [vmem:[#allocation8 + $0x4] sm:$0xf]
    %v370 = vld [vmem:[#allocation8 + $0x8] sm:$0xf]
    %v371 = vld [vmem:[#allocation8 + $0xc] sm:$0xf]
    %v372 = vld [vmem:[#allocation8 + $0x10] sm:$0xf]
    %v373 = vld [vmem:[#allocation8 + $0x14] sm:$0xf]
    %v374 = vld [vmem:[#allocation8 + $0x18] sm:$0xf]
    %v375 = vld [vmem:[#allocation8 + $0x1c] sm:$0xf]
    %v376 = vld [vmem:[#allocation8 + $0x20] sm:$0xf]
    %v377 = vld [vmem:[#allocation8 + $0x24] sm:$0xf]
    %v378 = vld [vmem:[#allocation8 + $0x28] sm:$0xf]
    %v379 = vld [vmem:[#allocation8 + $0x2c] sm:$0xf]
    %v380 = vld [vmem:[#allocation8 + $0x30] sm:$0xf]
    %v381 = vld [vmem:[#allocation8 + $0x34] sm:$0xf]
    %v382 = vld [vmem:[#allocation8 + $0x38] sm:$0xf]
    %v383 = vld [vmem:[#allocation8 + $0x3c] sm:$0xf]
    %v384 = vlaneseq
    %v385 = vshrl.u32 %v384, 7
    %v386 = vsub.s32 2, %v385
    %v387 = vrot.slane %v75, %v386
    %v404 = vunpack.c.l.b16 %v368
    %v405 = vunpack.c.l.b16 %v369
    %v406 = vunpack.c.l.b16 %v370
    %v407 = vunpack.c.l.b16 %v371
    %v408 = vunpack.c.l.b16 %v372
    %v409 = vunpack.c.l.b16 %v373
    %v410 = vunpack.c.l.b16 %v374
    %v411 = vunpack.c.l.b16 %v375
    %v412 = vunpack.c.l.b16 %v376
    %v413 = vunpack.c.l.b16 %v377
    %v414 = vunpack.c.l.b16 %v378
    %v415 = vunpack.c.l.b16 %v379
    %v416 = vunpack.c.l.b16 %v380
    %v417 = vunpack.c.l.b16 %v381
    %v418 = vunpack.c.l.b16 %v382
    %v419 = vunpack.c.l.b16 %v383
    %v420 = vpack.c.b16 %v405, %v404
    %v421 = vpack.c.b16 %v407, %v406
    %v422 = vpack.c.b16 %v409, %v408
    %v423 = vpack.c.b16 %v411, %v410
    %v424 = vpack.c.b16 %v413, %v412
    %v425 = vpack.c.b16 %v415, %v414
    %v426 = vpack.c.b16 %v417, %v416
    %v427 = vpack.c.b16 %v419, %v418
    %436 = vmatprep.subr.bf16.mxu0 0
    %437 = vmatpush1.bf16.msra.mxu0 %v427
    %438 = vmatprep.subr.bf16.mxu0 0
    %439 = vmatpush1.bf16.msra.mxu0 %v426
    %440 = vmatprep.subr.bf16.mxu0 0
    %441 = vmatpush1.bf16.msra.mxu0 %v425
    %442 = vmatprep.subr.bf16.mxu0 0
    %443 = vmatpush1.bf16.msra.mxu0 %v424
    %444 = vmatprep.subr.bf16.mxu0 0
    %445 = vmatpush1.bf16.msra.mxu0 %v423
    %446 = vmatprep.subr.bf16.mxu0 0
    %447 = vmatpush1.bf16.msra.mxu0 %v422
    %448 = vmatprep.subr.bf16.mxu0 0
    %449 = vmatpush1.bf16.msra.mxu0 %v421
    %450 = vmatprep.subr.bf16.mxu0 0
    %451 = vmatpush1.bf16.msra.mxu0 %v420
    %452 = vmatprep.subr.bf16.mxu0 0
    %453 = vmatpush2.bf16.msra.mxu0 0
    %454 = vmatprep.subr.bf16.mxu0 0
    %455 = vmatpush2.bf16.msra.mxu0 0
    %456 = vmatprep.subr.bf16.mxu0 0
    %457 = vmatpush2.bf16.msra.mxu0 0
    %458 = vmatprep.subr.bf16.mxu0 0
    %459 = vmatpush2.bf16.msra.mxu0 0
    %460 = vmatprep.subr.bf16.mxu0 0
    %461 = vmatpush2.bf16.msra.mxu0 0
    %462 = vmatprep.subr.bf16.mxu0 0
    %463 = vmatpush2.bf16.msra.mxu0 0
    %464 = vmatprep.subr.bf16.mxu0 0
    %465 = vmatpush2.bf16.msra.mxu0 0
    %466 = vmatprep.subr.bf16.mxu0 0
    %467 = vmatpush2.bf16.msra.mxu0 0
    %468 = vmatprep.mubr.bf16.mxu0 0
    %469 = vmatmul.mubr.bf16.gmra.mxu0 %v367
    %v470 = vpop.f32.mrf.mxu0
    %v471 = vadd.f32 %v387, %v470
    %v472 = vpop.f32.mrf.mxu0
    %v473 = vpop.f32.mrf.mxu0
    %v474 = vpop.f32.mrf.mxu0
    %475 = vdwg.mxu0
    %476 = vst [vmem:[#allocation10] sm:$0xff] %v471
    // Predicated region
    $region38: #{tpu_custom_call.1} parent=1 // pred_check
      _
    $region39: #{tpu_custom_call.1} parent=1 // pred_check_branch
      %478 = sbr.rel (0) target = $region41
    $region40: #{tpu_custom_call.1} parent=1 // pred_region
      %s480 = ssub.s32 128, 128
      %481 = vsyncadd [#allocation4], %s480
      %s483 = sshll.u32 [#allocation10], 4
      %s484 = int_to_ptr.vmem [resolvable:$true] %s483
      %486 = dma.vmem_to_hbm [thread:$0]  %s484, 128, %s5, [#allocation4]
    $region41: #{tpu_custom_call.1} parent=1 // pred_fallthru
      _
    // Predicated region
    $region42: #{tpu_custom_call.1} parent=1 // pred_check
      _
    $region43: #{tpu_custom_call.1} parent=1 // pred_check_branch
      %488 = sbr.rel (0) target = $region45
    $region44: #{tpu_custom_call.1} parent=1 // pred_region
      %489 = dma.done [#allocation4], 128
    $region45: #{tpu_custom_call.1} parent=1 // pred_fallthru
      _
    %490 = vsyncpa [#allocation3], 1
    %491 = vsyncpa [#allocation6], 1
    %492 = vsyncpa [#allocation9], 1
    %493 = vsyncpa [#allocation4], 1

</llo_original>
